<compile_context>
chip_gen: v5e
topology: v5e:2x2
jax: 0.10.0
libtpu: 0.0.40
codegen_flags: <defaults>
</compile_context>

<pallas_src>
import functools

import jax
import jax.numpy as jnp
from jax.experimental import pallas as pl
from jax.experimental.pallas import tpu as pltpu


def _round_up(x: int, m: int) -> int:
    return (x + m - 1) // m * m


def _cdiv(a: int, b: int) -> int:
    return -(-a // b)


def _kd_loss_kernel(s_ref, t_ref, o_ref, *, inv_T: float, scale: float,
                    batch: int, tile_b: int, mask_tail: bool):
    """One batch tile: partial KD loss already scaled by T^2 * factor / B_global.

    s_ref, t_ref: (tile_b, C) logits tile.
    o_ref:        (1, 8, 128) f32 block; the scalar partial is broadcast into it
                  (lane/sublane-dense, unmasked store); wrapper reads [i, 0, 0].
    """
    # Compute in f32 for stable softmax; inputs may be bf16 in HBM (storage only).
    s = s_ref[...].astype(jnp.float32)
    t = t_ref[...].astype(jnp.float32)

    if mask_tail:
        # Ragged last tile: zero garbage rows (global row >= B) BEFORE exp /
        # softmax so they contribute exactly 0 to the KL sum and can never
        # propagate Inf/NaN. For full tiles the select is an all-true no-op.
        i = pl.program_id(0)
        row = jax.lax.broadcasted_iota(jnp.int32, (tile_b, 1), 0)
        valid = (i * tile_b + row) < batch
        s = jnp.where(valid, s, 0.0)
        t = jnp.where(valid, t, 0.0)

    s = s * jnp.float32(inv_T)
    t = t * jnp.float32(inv_T)

    # Student log-softmax stats along the class axis (lanes).
    s_max = jnp.max(s, axis=1, keepdims=True)
    s_shift = s - s_max
    s_lse = jnp.log(jnp.sum(jnp.exp(s_shift), axis=1, keepdims=True))

    # Teacher softmax stats (kept unnormalized: t_exp, t_sum).
    t_max = jnp.max(t, axis=1, keepdims=True)
    t_shift = t - t_max
    t_exp = jnp.exp(t_shift)
    t_sum = jnp.sum(t_exp, axis=1, keepdims=True)
    t_lse = jnp.log(t_sum)

    # Per-row KL(p_t || p_s) without materializing p_t / log_p_t / log_p_s:
    #   sum_c p_t * (log p_t - log p_s)
    #     = (1/t_sum) * sum_c t_exp * (t_shift - s_shift)  -  (t_lse - s_lse)
    # -> only tile_b exact reciprocals instead of tile_b*C divisions.
    # TODO(synk): if a v7x bundle profile shows VALU saturation, move the three
    # class-axis sums to the MXU via a ones-matrix matmul.
    dot = jnp.sum(t_exp * (t_shift - s_shift), axis=1, keepdims=True)
    kl_rows = dot * pl.reciprocal(t_sum) - (t_lse - s_lse)

    partial = jnp.sum(kl_rows) * jnp.float32(scale)
    o_ref[...] = jnp.full((1, 8, 128), partial, dtype=jnp.float32)


def kd_loss(s_out, t_out, kl_loss_factor: float = 1.0, T: float = 1.0,
            block_rows=None):
    """Pallas TPU implementation of KDLoss.forward(s_out, t_out)."""
    assert s_out.shape == t_out.shape and s_out.ndim == 2
    B, C = s_out.shape

    itemsize = jnp.dtype(s_out.dtype).itemsize
    # Dtype-aware minimum sublane tile: f32 -> 8, bf16 -> 16, int8/fp8 -> 32.
    sublane = max(8, 32 // itemsize)

    # Per-TensorCore VMEM capacity (v5e/v6e: 128 MiB, v7x: 64 MiB); scope the
    # kernel to half of it so double-buffered pipelines never spill.
    try:
        vmem_cap = int(pltpu.get_tpu_info().vmem_capacity_bytes)
    except Exception:
        vmem_cap = 64 * 1024 * 1024  # conservative (v7x physical) fallback
    vmem_limit = min(vmem_cap // 2, 64 * 1024 * 1024)

    if block_rows is None:
        # Per-tile VMEM use ~= 2 inputs x 2 pipeline buffers x (tile_b*C*itemsize)
        #                     + ~6 full-tile f32 intermediates (s, t, shifts,
        #                       t_exp, diff); solve for tile_b with headroom for
        #                       compiler scratch / the tiny output block.
        budget = int(vmem_limit * 0.75)
        per_row_bytes = C * (4 * itemsize + 6 * 4)
        block_rows = max(sublane,
                         (budget // max(1, per_row_bytes)) // sublane * sublane)
    tile_b = _round_up(max(int(block_rows), sublane), sublane)
    # Never exceed the (rounded-up) batch ...
    tile_b = min(tile_b, _round_up(B, sublane))
    # ... and keep >= 2 tiles when B allows it so the "parallel" batch axis can
    # shard across v7x's two TensorCores (no effect on single-TC v5e/v6e).
    if B > sublane:
        tile_b = min(tile_b, _round_up(_cdiv(B, 2), sublane))

    num_tiles = _cdiv(B, tile_b)
    mask_tail = (B % tile_b) != 0

    kernel = functools.partial(
        _kd_loss_kernel,
        inv_T=1.0 / float(T),
        scale=float(T) * float(T) * float(kl_loss_factor) / float(B),
        batch=B,
        tile_b=tile_b,
        mask_tail=mask_tail,
    )

    partials = pl.pallas_call(
        kernel,
        out_shape=jax.ShapeDtypeStruct((num_tiles, 8, 128), jnp.float32),
        grid=(num_tiles,),
        in_specs=[
            pl.BlockSpec((tile_b, C), lambda i: (i, 0)),
            pl.BlockSpec((tile_b, C), lambda i: (i, 0)),
        ],
        # Disjoint per-tile output blocks -> batch axis can be "parallel".
        out_specs=pl.BlockSpec((1, 8, 128), lambda i: (i, 0, 0)),
        compiler_params=pltpu.CompilerParams(
            dimension_semantics=("parallel",),
            vmem_limit_bytes=int(vmem_limit),
        ),
    )(s_out, t_out)

    # TODO(synk): for vocabulary-scale C (32k-256k), add a class-axis grid with
    # online logsumexp (flash-softmax style) so batch tiles stay large within
    # v7x's 64 MiB VMEM; not needed for classifier-sized C.
    return jnp.sum(partials[:, 0, 0])


def _kd_loss_ref(s_out, t_out, kl_loss_factor=1.0, T=1.0):
    """Pure-JAX reference for correctness checking."""
    log_p_s = jax.nn.log_softmax(s_out / T, axis=1)
    p_t = jax.nn.softmax(t_out / T, axis=1)
    log_p_t = jax.nn.log_softmax(t_out / T, axis=1)
    kl = jnp.sum(p_t * (log_p_t - log_p_s)) / s_out.shape[0]
    return kl * T * T * kl_loss_factor


if __name__ == "__main__":
    key = jax.random.PRNGKey(0)
    k1, k2 = jax.random.split(key)

    # Small (batch, num_classes) logits; deliberately not multiples of (8, 128)
    # so the multi-tile grid + in-kernel ragged-tail masking path is exercised.
    B, C = 20, 160
    s_out = jax.random.normal(k1, (B, C), dtype=jnp.float32)
    t_out = jax.random.normal(k2, (B, C), dtype=jnp.float32)

    T = 4.0
    kl_loss_factor = 0.5

    loss = kd_loss(s_out, t_out, kl_loss_factor=kl_loss_factor, T=T)
    loss = jax.block_until_ready(loss)

    ref = _kd_loss_ref(s_out, t_out, kl_loss_factor=kl_loss_factor, T=T)
    assert jnp.allclose(loss, ref, rtol=1e-5, atol=1e-6), (loss, ref)

    print("KERNEL_OK")
</pallas_src>

<mosaic_0001>
module attributes {stable_mosaic.version = 11 : i64} {
  func.func @_kd_loss_kernel(%arg0: i32, %arg1: memref<16x160xf32, #tpu.memory_space<vmem>>, %arg2: memref<16x160xf32, #tpu.memory_space<vmem>>, %arg3: memref<1x8x128xf32, #tpu.memory_space<vmem>>) attributes {dimension_semantics = [#tpu.dimension_semantics<parallel>], iteration_bounds = array<i64: 2>, scalar_prefetch = 0 : i64, scratch_operands = 0 : i64, tpu.core_type = #tpu.core_type<tc>, window_params = [{transform_indices = @transform_0, window_bounds = array<i64: 16, 160>}, {transform_indices = @transform_1, window_bounds = array<i64: 16, 160>}, {transform_indices = @transform_2, window_bounds = array<i64: 1, 8, 128>}]} {
    %c0 = arith.constant 0 : index
    %c0_0 = arith.constant 0 : index
    %0 = vector.load %arg1[%c0, %c0_0] : memref<16x160xf32, #tpu.memory_space<vmem>>, vector<16x160xf32>
    %c0_1 = arith.constant 0 : index
    %c0_2 = arith.constant 0 : index
    %1 = vector.load %arg2[%c0_1, %c0_2] : memref<16x160xf32, #tpu.memory_space<vmem>>, vector<16x160xf32>
    %2 = tpu.iota {dimensions = array<i32: 0>} : vector<16x1xi32>
    %c16_i32 = arith.constant 16 : i32
    %3 = arith.muli %arg0, %c16_i32 : i32
    %4 = vector.broadcast %3 : i32 to vector<16x1xi32>
    %5 = arith.addi %4, %2 : vector<16x1xi32>
    %c20_i32 = arith.constant 20 : i32
    %6 = vector.broadcast %c20_i32 : i32 to vector<16x1xi32>
    %7 = arith.cmpi slt, %5, %6 : vector<16x1xi32>
    %cst = arith.constant 0.000000e+00 : f32
    %8 = vector.shape_cast %7 : vector<16x1xi1> to vector<16x1xi1>
    %9 = vector.broadcast %8 : vector<16x1xi1> to vector<16x160xi1>
    %10 = vector.broadcast %cst : f32 to vector<16x160xf32>
    %11 = arith.select %9, %0, %10 : vector<16x160xi1>, vector<16x160xf32>
    %cst_3 = arith.constant 0.000000e+00 : f32
    %12 = vector.shape_cast %7 : vector<16x1xi1> to vector<16x1xi1>
    %13 = vector.broadcast %12 : vector<16x1xi1> to vector<16x160xi1>
    %14 = vector.broadcast %cst_3 : f32 to vector<16x160xf32>
    %15 = arith.select %13, %1, %14 : vector<16x160xi1>, vector<16x160xf32>
    %cst_4 = arith.constant 2.500000e-01 : f32
    %16 = vector.broadcast %cst_4 : f32 to vector<16x160xf32>
    %17 = arith.mulf %11, %16 : vector<16x160xf32>
    %cst_5 = arith.constant 2.500000e-01 : f32
    %18 = vector.broadcast %cst_5 : f32 to vector<16x160xf32>
    %19 = arith.mulf %15, %18 : vector<16x160xf32>
    %cst_6 = arith.constant dense<0xFF800000> : vector<16xf32>
    %20 = vector.multi_reduction <maximumf>, %17, %cst_6 [1] : vector<16x160xf32> to vector<16xf32>
    %21 = vector.shape_cast %20 : vector<16xf32> to vector<16x1xf32>
    %22 = vector.broadcast %21 : vector<16x1xf32> to vector<16x160xf32>
    %23 = arith.subf %17, %22 : vector<16x160xf32>
    %24 = math.exp %23 : vector<16x160xf32>
    %cst_7 = arith.constant dense<0.000000e+00> : vector<16xf32>
    %25 = vector.multi_reduction <add>, %24, %cst_7 [1] : vector<16x160xf32> to vector<16xf32>
    %26 = vector.shape_cast %25 : vector<16xf32> to vector<16x1xf32>
    %27 = math.log %26 : vector<16x1xf32>
    %cst_8 = arith.constant dense<0xFF800000> : vector<16xf32>
    %28 = vector.multi_reduction <maximumf>, %19, %cst_8 [1] : vector<16x160xf32> to vector<16xf32>
    %29 = vector.shape_cast %28 : vector<16xf32> to vector<16x1xf32>
    %30 = vector.broadcast %29 : vector<16x1xf32> to vector<16x160xf32>
    %31 = arith.subf %19, %30 : vector<16x160xf32>
    %32 = math.exp %31 : vector<16x160xf32>
    %cst_9 = arith.constant dense<0.000000e+00> : vector<16xf32>
    %33 = vector.multi_reduction <add>, %32, %cst_9 [1] : vector<16x160xf32> to vector<16xf32>
    %34 = vector.shape_cast %33 : vector<16xf32> to vector<16x1xf32>
    %35 = math.log %34 : vector<16x1xf32>
    %36 = arith.subf %31, %23 : vector<16x160xf32>
    %37 = arith.mulf %32, %36 : vector<16x160xf32>
    %cst_10 = arith.constant dense<0.000000e+00> : vector<16xf32>
    %38 = vector.multi_reduction <add>, %37, %cst_10 [1] : vector<16x160xf32> to vector<16xf32>
    %39 = vector.shape_cast %38 : vector<16xf32> to vector<16x1xf32>
    %40 = tpu.reciprocal %34 : vector<16x1xf32> -> vector<16x1xf32>
    %41 = arith.mulf %39, %40 : vector<16x1xf32>
    %42 = arith.subf %35, %27 : vector<16x1xf32>
    %43 = arith.subf %41, %42 : vector<16x1xf32>
    %44 = vector.shape_cast %43 : vector<16x1xf32> to vector<1x16x1xf32>
    %cst_11 = arith.constant dense<0.000000e+00> : vector<1xf32>
    %45 = vector.multi_reduction <add>, %44, %cst_11 [1, 2] : vector<1x16x1xf32> to vector<1xf32>
    %46 = vector.shape_cast %45 : vector<1xf32> to vector<1x1x1xf32>
    %47 = vector.extract %46[0, 0, 0] : f32 from vector<1x1x1xf32>
    %cst_12 = arith.constant 4.000000e-01 : f32
    %48 = arith.mulf %47, %cst_12 : f32
    %49 = vector.broadcast %48 : f32 to vector<1x8x128xf32>
    %c0_13 = arith.constant 0 : index
    %c0_14 = arith.constant 0 : index
    %c0_15 = arith.constant 0 : index
    %50 = vector.load %arg3[%c0_13, %c0_14, %c0_15] : memref<1x8x128xf32, #tpu.memory_space<vmem>>, vector<1x8x128xf32>
    tpu.vector_store %arg3[%c0_13, %c0_14, %c0_15], %49 {strides = array<i32>} : memref<1x8x128xf32, #tpu.memory_space<vmem>>, vector<1x8x128xf32>,
    return
  }
  func.func @transform_0(%arg0: i32) -> (i32, i32) {
    %c0_i32 = arith.constant 0 : i32
    %c0_i32_0 = arith.constant 0 : i32
    return %arg0, %c0_i32 : i32, i32
  }
  func.func @transform_1(%arg0: i32) -> (i32, i32) {
    %c0_i32 = arith.constant 0 : i32
    %c0_i32_0 = arith.constant 0 : i32
    return %arg0, %c0_i32 : i32, i32
  }
  func.func @transform_2(%arg0: i32) -> (i32, i32, i32) {
    %c0_i32 = arith.constant 0 : i32
    %c0_i32_0 = arith.constant 0 : i32
    %c0_i32_1 = arith.constant 0 : i32
    return %arg0, %c0_i32, %c0_i32_0 : i32, i32, i32
  }
}

</mosaic_0001>

<llo_original>
// kernel: tpu_custom_call.1
$region0: #{tpu_custom_call.1}
  #allocation0 [shape = 'u32[]', space=smem, size = 0x4, offset = 0x4, fixed_abs, tag = 'smem constant byte address 0x4 - core index']
  #allocation1 [shape = 'u32[72,128]{1,0:T(1,128)}', space=vmem, size = 0x9000, scoped, tag = 'internal scratch']
  %s0 = inlined_call_operand.hbm [shape: f32[20,160], index: 0, kind: input, shape index: {}]
  %s1 = inlined_call_operand.hbm [shape: f32[20,160], index: 1, kind: input, shape index: {}]
  %s2 = inlined_call_operand.hbm [shape: f32[2,8,128], index: 2, kind: output, shape index: {}]
  %s3 = sld [smem:[#allocation0]]
  $region49: #{tpu_custom_call.1} parent=0
    _
  %s5 = ssub.s32 1, %s3
  %s6 = scalar_select 0, %s5, %s3
  $region1: #{tpu_custom_call.1} parent=0
    #allocation2 [shape = 'u8[32768]{0}', space=vmem, size = 0x8000, scoped, tag = 'input window, operand 0']
    #allocation3 [shape = 's32[2]{0}', space=sflag, size = 0x8, scoped, tag = 'scoped memory for tpu_custom_call.1']
    #allocation4 [shape = 's32[2]{0}', space=sflag, size = 0x8, scoped, tag = 'scoped memory for tpu_custom_call.1']
    #allocation5 [shape = 'u8[32768]{0}', space=vmem, size = 0x8000, scoped, tag = 'input window, operand 1']
    #allocation6 [shape = 's32[2]{0}', space=sflag, size = 0x8, scoped, tag = 'scoped memory for tpu_custom_call.1']
    #allocation7 [shape = 'u8[8192]{0}', space=vmem, size = 0x2000, scoped, tag = 'output window, operand 0']
    %7 = vsyncpa [#allocation3], 0
    %s8 = scalar_lea.sflag [#allocation3], 1
    %9 = vsyncpa %s8, 0
    %10 = vsyncpa [#allocation6], 0
    %s11 = scalar_lea.sflag [#allocation6], 1
    %12 = vsyncpa %s11, 0
    %13 = vsyncpa [#allocation4], 0
    %s14 = scalar_lea.sflag [#allocation4], 1
    %15 = vsyncpa %s14, 0
    loop: start=0, step=1, limit=4
    $region2: #{tpu_custom_call.1} parent=1 // loop_pre_header
      _
    $region3: #{tpu_custom_call.1} parent=1 // loop_header
      %s17 = sphi 0, %s21
      %p18 = scmp.ge.s32.totalorder %s17, 4
      %s27 = sphi 0, %s29
      %s30 = sphi 0, %s27
      %s31 = sphi 0, %s30
      %s47 = sphi 0, %s31
      %s53 = sphi 0, %s55
      %s56 = sphi 0, %s53
      %s57 = sphi 0, %s56
      %s73 = sphi 0, %s57
      %s79 = sphi 0, %s81
      %s82 = sphi 0, %s79
      %s83 = sphi 0, %s82
      %s99 = sphi 0, %s83
    $region4: #{tpu_custom_call.1} parent=1 // loop_header_branch
      %20 = sbr.rel (%p18) target = $region8
    $region5: #{tpu_custom_call.1} parent=1 // loop_body
      %s22 = ssub.s32 %s17, 1
      %s23 = ssub.s32 %s17, 2
      %s24 = sadd.s32 %s17, 1
      %s25 = ssub.s32 %s17, %s24
      %p26 = scmp.eq.s32.totalorder %s25, 0
      %s28 = sadd.s32 %s27, 1
      %s29 = scalar_select %p26, %s27, %s28
      %p32 = pneg %p26
      %p33 = scmp.eq.s32.totalorder %s17, 1
      %p34 = por %p32, %p33
      %p35 = scmp.ne.s32.totalorder %s27, %s30
      %p36 = scmp.eq.s32.totalorder %s17, 0
      %p37 = por %p35, %p36
      %p38 = scmp.ne.s32.totalorder %s27, %s30
      %p39 = scmp.eq.s32.totalorder %s22, 1
      %p40 = por %p38, %p39
      %p41 = scmp.ne.s32.totalorder %s30, %s31
      %p42 = scmp.eq.s32.totalorder %s22, 0
      %p43 = por %p41, %p42
      %p44 = scmp.ne.s32.totalorder %s30, %s31
      %p45 = scmp.eq.s32.totalorder %s23, 1
      %p46 = por %p44, %p45
      %p48 = scmp.ne.s32.totalorder %s31, %s47
      %p49 = scmp.eq.s32.totalorder %s23, 0
      %p50 = por %p48, %p49
      %s51 = ssub.s32 %s17, %s24
      %p52 = scmp.eq.s32.totalorder %s51, 0
      %s54 = sadd.s32 %s53, 1
      %s55 = scalar_select %p52, %s53, %s54
      %p58 = pneg %p52
      %p59 = scmp.eq.s32.totalorder %s17, 1
      %p60 = por %p58, %p59
      %p61 = scmp.ne.s32.totalorder %s53, %s56
      %p62 = scmp.eq.s32.totalorder %s17, 0
      %p63 = por %p61, %p62
      %p64 = scmp.ne.s32.totalorder %s53, %s56
      %p65 = scmp.eq.s32.totalorder %s22, 1
      %p66 = por %p64, %p65
      %p67 = scmp.ne.s32.totalorder %s56, %s57
      %p68 = scmp.eq.s32.totalorder %s22, 0
      %p69 = por %p67, %p68
      %p70 = scmp.ne.s32.totalorder %s56, %s57
      %p71 = scmp.eq.s32.totalorder %s23, 1
      %p72 = por %p70, %p71
      %p74 = scmp.ne.s32.totalorder %s57, %s73
      %p75 = scmp.eq.s32.totalorder %s23, 0
      %p76 = por %p74, %p75
      %s77 = ssub.s32 %s17, %s24
      %p78 = scmp.eq.s32.totalorder %s77, 0
      %s80 = sadd.s32 %s79, 1
      %s81 = scalar_select %p78, %s79, %s80
      %p84 = pneg %p78
      %p85 = scmp.eq.s32.totalorder %s17, 1
      %p86 = por %p84, %p85
      %p87 = scmp.ne.s32.totalorder %s79, %s82
      %p88 = scmp.eq.s32.totalorder %s17, 0
      %p89 = por %p87, %p88
      %p90 = scmp.ne.s32.totalorder %s79, %s82
      %p91 = scmp.eq.s32.totalorder %s22, 1
      %p92 = por %p90, %p91
      %p93 = scmp.ne.s32.totalorder %s82, %s83
      %p94 = scmp.eq.s32.totalorder %s22, 0
      %p95 = por %p93, %p94
      %p96 = scmp.ne.s32.totalorder %s82, %s83
      %p97 = scmp.eq.s32.totalorder %s23, 1
      %p98 = por %p96, %p97
      %p100 = scmp.ne.s32.totalorder %s83, %s99
      %p101 = scmp.eq.s32.totalorder %s23, 0
      %p102 = por %p100, %p101
      %p103 = scmp.le.s32.totalorder 1, %s17
      %p104 = scmp.lt.s32.totalorder %s17, 3
      %p105 = pnand %p103, %p104
      %p106 = pneg %p105
      // Predicated region
      $region9: #{tpu_custom_call.1} parent=5 // pred_check
        _
      $region10: #{tpu_custom_call.1} parent=5 // pred_check_branch
        %108 = sbr.rel (%p105) target = $region12
      $region11: #{tpu_custom_call.1} parent=5 // pred_region
        %s109 = ssub.s32 %s17, 1
      $region12: #{tpu_custom_call.1} parent=5 // pred_fallthru
        _
      %p110 = scmp.lt.s32.totalorder %s17, 2
      // Predicated region
      $region13: #{tpu_custom_call.1} parent=5 // pred_check
        %p111 = pneg %p110
      $region14: #{tpu_custom_call.1} parent=5 // pred_check_branch
        %113 = sbr.rel (%p111) target = $region16
      $region15: #{tpu_custom_call.1} parent=5 // pred_region
        // Predicated region
        $region17: #{tpu_custom_call.1} parent=15 // pred_check
          %p114 = pneg %p37
        $region18: #{tpu_custom_call.1} parent=15 // pred_check_branch
          %116 = sbr.rel (%p114) target = $region20
        $region19: #{tpu_custom_call.1} parent=15 // pred_region
          %s117 = sand.u32 %s27, 1
          %s118 = scalar_lea.sflag [#allocation3], %s117
          %s119 = sand.u32 %s27, 1
          %s120 = smul.addr %s119, 32
          %s121 = scalar_lea.vmem [#allocation2], %s120
          %s122 = smul.u32 2, %s17
          %s123 = ssub.s32 3, %s122
          %p124 = scmp.lt.s32.totalorder %s123, 2
          %s125 = scalar_select %p124, %s123, 2
          %s126 = smul.u32 8, %s125
          %s127 = smul.u32 %s126, 2
          %s128 = ssub.s32 32, %s127
          %s129 = sshll.u32 %s128, 4
          %130 = vsyncadd %s118, %s129
          %p131 = scmp.ne.s32.totalorder 0, %s127
          %s132 = smul.addr %s122, 2
          %s133 = smul.addr %s132, 8
          %s134 = scalar_lea.hbm %s0, %s133
          %s135 = smul.u32 16, %s125
          %s136 = sshll.u32 %s134, 4
          %s137 = int_to_ptr.hbm [resolvable:$true] %s136
          %s138 = sshll.u32 %s121, 4
          %s139 = int_to_ptr.vmem [resolvable:$true] %s138
          %s140 = sshll.u32 %s135, 4
          %144 = dma.hbm_to_vmem [thread:$0]  (%p131), %s137, %s140, %s139, %s118, 256, 256, 16
        $region20: #{tpu_custom_call.1} parent=15 // pred_fallthru
          _
        // Predicated region
        $region21: #{tpu_custom_call.1} parent=15 // pred_check
          %p145 = pneg %p63
        $region22: #{tpu_custom_call.1} parent=15 // pred_check_branch
          %147 = sbr.rel (%p145) target = $region24
        $region23: #{tpu_custom_call.1} parent=15 // pred_region
          %s148 = sand.u32 %s53, 1
          %s149 = scalar_lea.sflag [#allocation6], %s148
          %s150 = sand.u32 %s53, 1
          %s151 = smul.addr %s150, 32
          %s152 = scalar_lea.vmem [#allocation5], %s151
          %s153 = smul.u32 2, %s17
          %s154 = ssub.s32 3, %s153
          %p155 = scmp.lt.s32.totalorder %s154, 2
          %s156 = scalar_select %p155, %s154, 2
          %s157 = smul.u32 8, %s156
          %s158 = smul.u32 %s157, 2
          %s159 = ssub.s32 32, %s158
          %s160 = sshll.u32 %s159, 4
          %161 = vsyncadd %s149, %s160
          %p162 = scmp.ne.s32.totalorder 0, %s158
          %s163 = smul.addr %s153, 2
          %s164 = smul.addr %s163, 8
          %s165 = scalar_lea.hbm %s1, %s164
          %s166 = smul.u32 16, %s156
          %s167 = sshll.u32 %s165, 4
          %s168 = int_to_ptr.hbm [resolvable:$true] %s167
          %s169 = sshll.u32 %s152, 4
          %s170 = int_to_ptr.vmem [resolvable:$true] %s169
          %s171 = sshll.u32 %s166, 4
          %175 = dma.hbm_to_vmem [thread:$0]  (%p162), %s168, %s171, %s170, %s149, 256, 256, 16
        $region24: #{tpu_custom_call.1} parent=15 // pred_fallthru
          _
      $region16: #{tpu_custom_call.1} parent=5 // pred_fallthru
        _
      %p176 = scmp.le.s32.totalorder 1, %s17
      %p177 = scmp.lt.s32.totalorder %s17, 3
      %p178 = pnand %p176, %p177
      %p179 = pneg %p178
      // Predicated region
      $region25: #{tpu_custom_call.1} parent=5 // pred_check
        _
      $region26: #{tpu_custom_call.1} parent=5 // pred_check_branch
        %181 = sbr.rel (%p178) target = $region28
      $region27: #{tpu_custom_call.1} parent=5 // pred_region
        %s182 = ssub.s32 %s17, 1
        %s183 = sand.u32 %s30, 1
        %s184 = scalar_lea.sflag [#allocation3], %s183
        %s185 = sand.u32 %s30, 1
        %s186 = smul.addr %s185, 32
        %s187 = scalar_lea.vmem [#allocation2], %s186
        // Predicated region
        $region29: #{tpu_custom_call.1} parent=27 // pred_check
          %p188 = pneg %p43
        $region30: #{tpu_custom_call.1} parent=27 // pred_check_branch
          %190 = sbr.rel (%p188) target = $region32
        $region31: #{tpu_custom_call.1} parent=27 // pred_region
          %192 = dma.done %s184, 512
        $region32: #{tpu_custom_call.1} parent=27 // pred_fallthru
          _
        %s193 = sand.u32 %s56, 1
        %s194 = scalar_lea.sflag [#allocation6], %s193
        %s195 = sand.u32 %s56, 1
        %s196 = smul.addr %s195, 32
        %s197 = scalar_lea.vmem [#allocation5], %s196
        // Predicated region
        $region33: #{tpu_custom_call.1} parent=27 // pred_check
          %p198 = pneg %p69
        $region34: #{tpu_custom_call.1} parent=27 // pred_check_branch
          %200 = sbr.rel (%p198) target = $region36
        $region35: #{tpu_custom_call.1} parent=27 // pred_region
          %202 = dma.done %s194, 512
        $region36: #{tpu_custom_call.1} parent=27 // pred_fallthru
          _
        %s203 = sand.u32 %s30, 1
        %s204 = scalar_lea.sflag [#allocation3], %s203
        %s205 = sand.u32 %s30, 1
        %s206 = smul.addr %s205, 32
        %s207 = scalar_lea.vmem [#allocation2], %s206
        %p208 = pneg %p43
        %p209 = pneg %p40
        %s210 = sand.u32 %s56, 1
        %s211 = scalar_lea.sflag [#allocation6], %s210
        %s212 = sand.u32 %s56, 1
        %s213 = smul.addr %s212, 32
        %s214 = scalar_lea.vmem [#allocation5], %s213
        %p215 = pneg %p69
        %p216 = pneg %p66
        %p217 = pneg %p95
        %p218 = pneg %p92
        %s219 = sand.u32 %s82, 1
        %s220 = scalar_lea.sflag [#allocation4], %s219
        %s221 = sand.u32 %s82, 1
        %s222 = smul.addr %s221, 8
        %s223 = scalar_lea.vmem [#allocation7], %s222
        %s224 = smul.u32 2, %s22
        %s225 = ssub.s32 3, %s224
        %p226 = scmp.lt.s32.totalorder %s225, 2
        %s227 = scalar_select %p226, %s225, 2
        %s228 = smul.u32 8, %s227
        %s229 = smul.u32 %s228, 2
        %s230 = smul.u32 2, %s22
        %s231 = ssub.s32 3, %s230
        %p232 = scmp.lt.s32.totalorder %s231, 2
        %s233 = scalar_select %p232, %s231, 2
        %s234 = smul.u32 8, %s233
        %s235 = smul.u32 %s234, 2
        %v236 = vld [vmem:[%s187] sm:$0xff]
        %v237 = vld [vmem:[%s187 + $0x8] sm:$0xff]
        %v238 = vld [vmem:[%s187 + $0x10] sm:$0xff]
        %v239 = vld [vmem:[%s187 + $0x18] sm:$0xff]
        %v240 = vld [vmem:[%s197] sm:$0xff]
        %v241 = vld [vmem:[%s197 + $0x8] sm:$0xff]
        %v242 = vld [vmem:[%s197 + $0x10] sm:$0xff]
        %v243 = vld [vmem:[%s197 + $0x18] sm:$0xff]
        %v244 = vlaneseq
        %v245 = vshrl.u32 %v244, 7
        %v246 = vadd.s32 %v245, 8
        %s247 = smul.u32 %s22, 16
        %v248 = vstv %s247
        %v249 = vadd.s32 %v248, %v245
        %v250 = vadd.s32 %v248, %v246
        %vm251 = vcmp.lt.s32.totalorder %v249, 20
        %vm252 = vcmp.lt.s32.totalorder %v250, 20
        %v253 = vsel %vm251, 1, 0
        %v254 = vsel %vm252, 1, 0
        %vm255 = vcmp.eq.s32.totalorder %v253, 1
        %vm256 = vcmp.eq.s32.totalorder %v254, 1
        %v257 = vsel %vm255, %v236, 0.0
        %v258 = vsel %vm255, %v237, 0.0
        %v259 = vsel %vm256, %v238, 0.0
        %v260 = vsel %vm256, %v239, 0.0
        %v261 = vsel %vm255, %v240, 0.0
        %v262 = vsel %vm255, %v241, 0.0
        %v263 = vsel %vm256, %v242, 0.0
        %v264 = vsel %vm256, %v243, 0.0
        %v265 = vmul.f32 %v257, 0.25
        %v266 = vmul.f32 %v258, 0.25
        %v267 = vmul.f32 %v259, 0.25
        %v268 = vmul.f32 %v260, 0.25
        %v269 = vmul.f32 %v261, 0.25
        %v270 = vmul.f32 %v262, 0.25
        %v271 = vmul.f32 %v263, 0.25
        %v272 = vmul.f32 %v264, 0.25
        %vm273 = vcmask 261120
        %v274 = vsel %vm273, %v266, -inf
        %v275 = vmax.f32 %v265, %v274
        %276 = vmax.xlane.f32.xlu0 %v275
        %v277 = vpop.xlane.xlu0 %276
        %v278 = vsel %vm273, %v268, -inf
        %v279 = vmax.f32 %v267, %v278
        %280 = vmax.xlane.f32.xlu0 %v279
        %v281 = vpop.xlane.xlu0 %280
        %v282 = vsub.f32 %v265, %v277
        %v283 = vsub.f32 %v266, %v277
        %v284 = vsub.f32 %v267, %v281
        %v285 = vsub.f32 %v268, %v281
        %v286 = vmul.f32 %v282, 1.442695
        %v287 = vpow.pop %v286
        %v288 = vmul.f32 %v283, 1.442695
        %v289 = vpow.pop %v288
        %v290 = vmul.f32 %v284, 1.442695
        %v291 = vpow.pop %v290
        %v292 = vmul.f32 %v285, 1.442695
        %v293 = vpow.pop %v292
        %v294 = vsel %vm273, %v289, 0.0
        %v295 = vadd.f32 %v287, %v294
        %296 = vadd.xlane.f32.xlu0 %v295
        %v297 = vpop.xlane.xlu0 %296
        %v298 = vsel %vm273, %v293, 0.0
        %v299 = vadd.f32 %v291, %v298
        %300 = vadd.xlane.f32.xlu0 %v299
        %v301 = vpop.xlane.xlu0 %300
        %v302 = vlog2.pop %v297
        %v303 = vmul.f32 %v302, 0.6931472
        %v304 = vlog2.pop %v301
        %v305 = vmul.f32 %v304, 0.6931472
        %v306 = vsel %vm273, %v270, -inf
        %v307 = vmax.f32 %v269, %v306
        %308 = vmax.xlane.f32.xlu0 %v307
        %v309 = vpop.xlane.xlu0 %308
        %v310 = vsel %vm273, %v272, -inf
        %v311 = vmax.f32 %v271, %v310
        %312 = vmax.xlane.f32.xlu0 %v311
        %v313 = vpop.xlane.xlu0 %312
        %v314 = vsub.f32 %v269, %v309
        %v315 = vsub.f32 %v270, %v309
        %v316 = vsub.f32 %v271, %v313
        %v317 = vsub.f32 %v272, %v313
        %v318 = vmul.f32 %v314, 1.442695
        %v319 = vpow.pop %v318
        %v320 = vmul.f32 %v315, 1.442695
        %v321 = vpow.pop %v320
        %v322 = vmul.f32 %v316, 1.442695
        %v323 = vpow.pop %v322
        %v324 = vmul.f32 %v317, 1.442695
        %v325 = vpow.pop %v324
        %v326 = vsel %vm273, %v321, 0.0
        %v327 = vadd.f32 %v319, %v326
        %328 = vadd.xlane.f32.xlu0 %v327
        %v329 = vpop.xlane.xlu0 %328
        %v330 = vsel %vm273, %v325, 0.0
        %v331 = vadd.f32 %v323, %v330
        %332 = vadd.xlane.f32.xlu0 %v331
        %v333 = vpop.xlane.xlu0 %332
        %v334 = vlog2.pop %v329
        %v335 = vmul.f32 %v334, 0.6931472
        %v336 = vlog2.pop %v333
        %v337 = vmul.f32 %v336, 0.6931472
        %v338 = vsub.f32 %v314, %v282
        %v339 = vsub.f32 %v315, %v283
        %v340 = vsub.f32 %v316, %v284
        %v341 = vsub.f32 %v317, %v285
        %v342 = vmul.f32 %v319, %v338
        %v343 = vmul.f32 %v321, %v339
        %v344 = vmul.f32 %v323, %v340
        %v345 = vmul.f32 %v325, %v341
        %v346 = vsel %vm273, %v343, 0.0
        %v347 = vadd.f32 %v342, %v346
        %348 = vadd.xlane.f32.xlu0 %v347
        %v349 = vpop.xlane.xlu0 %348
        %v350 = vsel %vm273, %v345, 0.0
        %v351 = vadd.f32 %v344, %v350
        %352 = vadd.xlane.f32.xlu0 %v351
        %v353 = vpop.xlane.xlu0 %352
        %v354 = vrcp.pop %v329
        %v355 = vmul.f32 %v329, %v354
        %v356 = vsub.f32 1.0, %v355
        %v357 = vmul.f32 %v354, %v356
        %v358 = vadd.f32 %v354, %v357
        %vm359 = vweird.f32 %v329
        %vm360 = vweird.f32 %v354
        %vm361 = vmor %vm359, %vm360
        %v362 = vsel %vm361, %v354, %v358
        %v363 = vand.u32 2147483647, %v329
        %vm364 = vcmp.eq.f32.partialorder %v363, 8.507059e+37
        %v365 = vand.u32 %v329, 2147483648
        %v366 = vor.u32 1.1754944e-38, %v365
        %v367 = vsel %vm364, %v366, %v362
        %v368 = vrcp.pop %v333
        %v369 = vmul.f32 %v333, %v368
        %v370 = vsub.f32 1.0, %v369
        %v371 = vmul.f32 %v368, %v370
        %v372 = vadd.f32 %v368, %v371
        %vm373 = vweird.f32 %v333
        %vm374 = vweird.f32 %v368
        %vm375 = vmor %vm373, %vm374
        %v376 = vsel %vm375, %v368, %v372
        %v377 = vand.u32 2147483647, %v333
        %vm378 = vcmp.eq.f32.partialorder %v377, 8.507059e+37
        %v379 = vand.u32 %v333, 2147483648
        %v380 = vor.u32 1.1754944e-38, %v379
        %v381 = vsel %vm378, %v380, %v376
        %v382 = vmul.f32 %v349, %v367
        %v383 = vmul.f32 %v353, %v381
        %v384 = vsub.f32 %v335, %v303
        %v385 = vsub.f32 %v337, %v305
        %v386 = vsub.f32 %v382, %v384
        %v387 = vsub.f32 %v383, %v385
        %vm388 = vcmask 7168
        %v389 = vsel %vm388, %v386, 0.0
        %v390 = vsel %vm388, %v387, 0.0
        %v391 = vadd.f32 %v389, %v390
        %392 = vadd.xlane.f32.xlu0 %v391
        %v393 = vpop.xlane.xlu0 %392
        %v394 = vrot.slane %v393, 4
        %v395 = vadd.f32 %v393, %v394
        %v396 = vrot.slane %v395, 2
        %v397 = vadd.f32 %v395, %v396
        %v398 = vrot.slane %v397, 1
        %v399 = vadd.f32 %v397, %v398
        %s400 = vtos %v399
        %s401 = smul.f32 %s400, 0.4
        %v402 = vstv %s401
        %403 = vst [vmem:[%s223] sm:$0xff] %v402
        %s404 = sand.u32 %s82, 1
        %s405 = scalar_lea.sflag [#allocation4], %s404
        %s406 = sand.u32 %s82, 1
        %s407 = smul.addr %s406, 8
        %s408 = scalar_lea.vmem [#allocation7], %s407
        // Predicated region
        $region37: #{tpu_custom_call.1} parent=27 // pred_check
          %p409 = pneg %p92
        $region38: #{tpu_custom_call.1} parent=27 // pred_check_branch
          %411 = sbr.rel (%p409) target = $region40
        $region39: #{tpu_custom_call.1} parent=27 // pred_region
          %413 = vsyncadd %s405, 0
          %s414 = smul.addr %s22, 8
          %s415 = scalar_lea.hbm %s2, %s414
          %s417 = sshll.u32 %s408, 4
          %s418 = int_to_ptr.vmem [resolvable:$true] %s417
          %s419 = sshll.u32 %s415, 4
          %s420 = int_to_ptr.hbm [resolvable:$true] %s419
          %422 = dma.vmem_to_hbm [thread:$0]  %s418, 128, %s420, %s405
        $region40: #{tpu_custom_call.1} parent=27 // pred_fallthru
          _
      $region28: #{tpu_custom_call.1} parent=5 // pred_fallthru
        _
      %p423 = scmp.le.s32.totalorder 2, %s17
      // Predicated region
      $region41: #{tpu_custom_call.1} parent=5 // pred_check
        %p424 = pneg %p423
      $region42: #{tpu_custom_call.1} parent=5 // pred_check_branch
        %426 = sbr.rel (%p424) target = $region44
      $region43: #{tpu_custom_call.1} parent=5 // pred_region
        %s427 = ssub.s32 %s17, 2
        // Predicated region
        $region45: #{tpu_custom_call.1} parent=43 // pred_check
          %p428 = pneg %p98
        $region46: #{tpu_custom_call.1} parent=43 // pred_check_branch
          %430 = sbr.rel (%p428) target = $region48
        $region47: #{tpu_custom_call.1} parent=43 // pred_region
          %s431 = sand.u32 %s83, 1
          %s432 = scalar_lea.sflag [#allocation4], %s431
          %s433 = sand.u32 %s83, 1
          %s434 = smul.addr %s433, 8
          %s435 = scalar_lea.vmem [#allocation7], %s434
          %437 = dma.done %s432, 128
        $region48: #{tpu_custom_call.1} parent=43 // pred_fallthru
          _
      $region44: #{tpu_custom_call.1} parent=5 // pred_fallthru
        _
    $region6: #{tpu_custom_call.1} parent=1 // loop_footer
      %s21 = sadd.s32 1, %s17
    $region7: #{tpu_custom_call.1} parent=1 // loop_footer_branch
      %16 = sbr.rel target = $region3
    $region8: #{tpu_custom_call.1} parent=1 // loop_exit
      _
    %438 = vsyncpa [#allocation3], 1
    %s439 = scalar_lea.sflag [#allocation3], 1
    %440 = vsyncpa %s439, 1
    %441 = vsyncpa [#allocation6], 1
    %s442 = scalar_lea.sflag [#allocation6], 1
    %443 = vsyncpa %s442, 1
    %444 = vsyncpa [#allocation4], 1
    %s445 = scalar_lea.sflag [#allocation4], 1
    %446 = vsyncpa %s445, 1

</llo_original>
